<compile_context>
chip_gen: v7x
topology: tpu7x:2x2x1
jax: 0.10.0
libtpu: 0.0.40
codegen_flags: <defaults>
</compile_context>

<pallas_src>
import functools

import jax
import jax.numpy as jnp
from jax.experimental import pallas as pl
from jax.experimental.pallas import tpu as pltpu

HIDDEN = 360                      # matches nn.Linear(dim_input, 360)
LANE = 128
HIDDEN_PAD = ((HIDDEN + LANE - 1) // LANE) * LANE   # 384 = 3 * 128


def _round_up(x, m):
    return ((x + m - 1) // m) * m


def _mlp_kernel(x_ref, w1_ref, b1_ref, w2_ref, b2_ref, o_ref):
    """o = (x @ w1 + b1) @ w2 + b2 on lane-padded, pre-transposed weights."""
    # Hidden layer: bf16 matmul, f32 accumulation, f32 bias add.
    h = jnp.dot(x_ref[...], w1_ref[...], preferred_element_type=jnp.float32)
    h = h + b1_ref[...]                       # broadcast [1, Hp] over batch (f32)
    # Output layer: cast activation to bf16 for the MXU, accumulate f32.
    o = jnp.dot(h.astype(w2_ref.dtype), w2_ref[...],
                preferred_element_type=jnp.float32)
    o_ref[...] = (o + b2_ref[...]).astype(o_ref.dtype)


def prepare_params(w1, b1, w2, b2, compute_dtype=jnp.bfloat16):
    """One-time glue: transpose, zero-pad to lane-aligned widths, cast to bf16.

    w1: [HIDDEN, dim_input], b1: [HIDDEN]          (PyTorch Linear convention)
    w2: [dim_output, HIDDEN], b2: [dim_output]
    Zero padding is mathematically inert (padded hidden units contribute 0,
    padded output columns are sliced off in the wrapper).
    """
    hidden, dim_input = w1.shape
    dim_output, hidden2 = w2.shape
    assert hidden == HIDDEN and hidden2 == HIDDEN, (
        f"expected hidden width {HIDDEN}, got {hidden}/{hidden2}")
    assert b1.shape == (HIDDEN,) and b2.shape == (dim_output,)

    n_pad = _round_up(dim_output, LANE)       # lane-dense output stores

    w1_t = jnp.zeros((dim_input, HIDDEN_PAD), compute_dtype)
    w1_t = w1_t.at[:, :HIDDEN].set(w1.T.astype(compute_dtype))
    b1_r = jnp.zeros((1, HIDDEN_PAD), jnp.float32).at[:, :HIDDEN].set(b1)

    w2_t = jnp.zeros((HIDDEN_PAD, n_pad), compute_dtype)
    w2_t = w2_t.at[:HIDDEN, :dim_output].set(w2.T.astype(compute_dtype))
    b2_r = jnp.zeros((1, n_pad), jnp.float32).at[:, :dim_output].set(b2)

    params = {"w1_t": w1_t, "b1": b1_r, "w2_t": w2_t, "b2": b2_r}
    return params, dim_output


def linear_regression_forward(x, params, dim_output, *, tb=128):
    """Forward pass.  x: [B, dim_input] -> [B, dim_output] (float32).

    tb: batch tile for the gridded path (128 is a good default on all
    generations; use 256 on v6e/v7x once B is large to fill the 256-wide MXU).
    """
    w1_t, b1_r, w2_t, b2_r = (params["w1_t"], params["b1"],
                              params["w2_t"], params["b2"])
    B, dim_input = x.shape
    n_pad = w2_t.shape[1]
    x_in = x.astype(w1_t.dtype)

    vmem = pltpu.MemorySpace.VMEM

    if B <= tb:
        # Tiny problem: no grid at all -> no per-step pipeline overhead.
        out_pad = pl.pallas_call(
            _mlp_kernel,
            out_shape=jax.ShapeDtypeStruct((B, n_pad), jnp.float32),
            in_specs=[pl.BlockSpec(memory_space=vmem)] * 5,
            out_specs=pl.BlockSpec(memory_space=vmem),
        )(x_in, w1_t, b1_r, w2_t, b2_r)
        return out_pad[:, :dim_output]

    # Larger batch: tile the batch axis; weights/biases stay VMEM-resident
    # (index_map always returns block (0, 0)); batch axis is "parallel" so
    # Mosaic can shard grid steps across v7x's two TensorCores and
    # double-buffer the x / out tiles.
    b_pad = _round_up(B, tb)
    if b_pad != B:
        x_in = jnp.pad(x_in, ((0, b_pad - B), (0, 0)))
    out_pad = pl.pallas_call(
        _mlp_kernel,
        out_shape=jax.ShapeDtypeStruct((b_pad, n_pad), jnp.float32),
        grid=(b_pad // tb,),
        in_specs=[
            pl.BlockSpec((tb, dim_input), lambda i: (i, 0)),
            pl.BlockSpec((dim_input, HIDDEN_PAD), lambda i: (0, 0)),
            pl.BlockSpec((1, HIDDEN_PAD), lambda i: (0, 0)),
            pl.BlockSpec((HIDDEN_PAD, n_pad), lambda i: (0, 0)),
            pl.BlockSpec((1, n_pad), lambda i: (0, 0)),
        ],
        out_specs=pl.BlockSpec((tb, n_pad), lambda i: (i, 0)),
        compiler_params=pltpu.CompilerParams(
            dimension_semantics=("parallel",)),
    )(x_in, w1_t, b1_r, w2_t, b2_r)
    return out_pad[:B, :dim_output]


def init_params(key, dim_input, dim_output):
    """PyTorch-style default Linear init (uniform in +/- 1/sqrt(fan_in))."""
    k1, k2, k3, k4 = jax.random.split(key, 4)
    bound1 = 1.0 / jnp.sqrt(dim_input)
    bound2 = 1.0 / jnp.sqrt(HIDDEN)
    w1 = jax.random.uniform(k1, (HIDDEN, dim_input), jnp.float32, -bound1, bound1)
    b1 = jax.random.uniform(k2, (HIDDEN,), jnp.float32, -bound1, bound1)
    w2 = jax.random.uniform(k3, (dim_output, HIDDEN), jnp.float32, -bound2, bound2)
    b2 = jax.random.uniform(k4, (dim_output,), jnp.float32, -bound2, bound2)
    return w1, b1, w2, b2


if __name__ == "__main__":
    key = jax.random.PRNGKey(0)
    kx, kx2, kp = jax.random.split(key, 3)

    batch = 8
    dim_input = 32
    dim_output = 16

    w1, b1, w2, b2 = init_params(kp, dim_input, dim_output)
    params, d_out = prepare_params(w1, b1, w2, b2)   # one-time transpose/pad/cast

    def ref_fn(xx):  # plain-JAX reference, same semantics as the PyTorch module
        return (xx @ w1.T + b1) @ w2.T + b2

    # --- small batch: gridless path ---
    x = jax.random.normal(kx, (batch, dim_input), jnp.float32)
    out = jax.block_until_ready(linear_regression_forward(x, params, d_out))
    assert out.shape == (batch, dim_output)
    assert jnp.allclose(out, ref_fn(x), atol=3e-2, rtol=3e-2), "small-batch mismatch"

    # --- larger batch: batch-tiled, megacore-parallel path ---
    batch2 = 300
    x2 = jax.random.normal(kx2, (batch2, dim_input), jnp.float32)
    out2 = jax.block_until_ready(
        linear_regression_forward(x2, params, d_out, tb=128))
    assert out2.shape == (batch2, dim_output)
    assert jnp.allclose(out2, ref_fn(x2), atol=3e-2, rtol=3e-2), "tiled-batch mismatch"

    print("KERNEL_OK")
</pallas_src>

<mosaic_0001>
module attributes {stable_mosaic.version = 11 : i64} {
  func.func @_mlp_kernel(%arg0: memref<8x32xbf16, #tpu.memory_space<vmem>>, %arg1: memref<32x384xbf16, #tpu.memory_space<vmem>>, %arg2: memref<1x384xf32, #tpu.memory_space<vmem>>, %arg3: memref<384x128xbf16, #tpu.memory_space<vmem>>, %arg4: memref<1x128xf32, #tpu.memory_space<vmem>>, %arg5: memref<8x128xf32, #tpu.memory_space<vmem>>) attributes {dimension_semantics = [], scalar_prefetch = 0 : i64, scratch_operands = 0 : i64, tpu.core_type = #tpu.core_type<tc>} {
    %c0 = arith.constant 0 : index
    %c0_0 = arith.constant 0 : index
    %0 = vector.load %arg0[%c0, %c0_0] : memref<8x32xbf16, #tpu.memory_space<vmem>>, vector<8x32xbf16>
    %c0_1 = arith.constant 0 : index
    %c0_2 = arith.constant 0 : index
    %1 = vector.load %arg1[%c0_1, %c0_2] : memref<32x384xbf16, #tpu.memory_space<vmem>>, vector<32x384xbf16>
    %cst = arith.constant dense<0.000000e+00> : vector<8x384xf32>
    %2 = tpu.matmul %0, %1, %cst {dimension_numbers = #tpu.dot_dimension_numbers<[1], [0], [0], [1], [0, 0, 1, 1], [], []>} : vector<8x32xbf16>, vector<32x384xbf16>, vector<8x384xf32> -> vector<8x384xf32>
    %c0_3 = arith.constant 0 : index
    %c0_4 = arith.constant 0 : index
    %3 = vector.load %arg2[%c0_3, %c0_4] : memref<1x384xf32, #tpu.memory_space<vmem>>, vector<1x384xf32>
    %4 = vector.broadcast %3 : vector<1x384xf32> to vector<8x384xf32>
    %5 = arith.addf %2, %4 : vector<8x384xf32>
    %6 = arith.truncf %5 : vector<8x384xf32> to vector<8x384xbf16>
    %c0_5 = arith.constant 0 : index
    %c0_6 = arith.constant 0 : index
    %7 = vector.load %arg3[%c0_5, %c0_6] : memref<384x128xbf16, #tpu.memory_space<vmem>>, vector<384x128xbf16>
    %cst_7 = arith.constant dense<0.000000e+00> : vector<8x128xf32>
    %8 = tpu.matmul %6, %7, %cst_7 {dimension_numbers = #tpu.dot_dimension_numbers<[1], [0], [0], [1], [0, 0, 1, 1], [], []>} : vector<8x384xbf16>, vector<384x128xbf16>, vector<8x128xf32> -> vector<8x128xf32>
    %c0_8 = arith.constant 0 : index
    %c0_9 = arith.constant 0 : index
    %9 = vector.load %arg4[%c0_8, %c0_9] : memref<1x128xf32, #tpu.memory_space<vmem>>, vector<1x128xf32>
    %10 = vector.broadcast %9 : vector<1x128xf32> to vector<8x128xf32>
    %11 = arith.addf %8, %10 : vector<8x128xf32>
    %c0_10 = arith.constant 0 : index
    %c0_11 = arith.constant 0 : index
    %12 = vector.load %arg5[%c0_10, %c0_11] : memref<8x128xf32, #tpu.memory_space<vmem>>, vector<8x128xf32>
    tpu.vector_store %arg5[%c0_10, %c0_11], %11 {strides = array<i32>} : memref<8x128xf32, #tpu.memory_space<vmem>>, vector<8x128xf32>,
    return
  }
}

</mosaic_0001>

<llo_original>
// kernel: tpu_custom_call.1
$region0: #{tpu_custom_call.1}
  #allocation0 [shape = 'u32[]', space=smem, size = 0x4, offset = 0x4, fixed_abs, tag = 'smem constant byte address 0x4 - core index']
  #allocation1 [shape = 'u32[144,128]{1,0:T(1,128)}', space=vmem, size = 0x12000, scoped, tag = 'internal scratch']
  %s0 = inlined_call_operand.hbm [shape: bf16[8,32], index: 0, kind: input, shape index: {}]
  %s1 = inlined_call_operand.hbm [shape: bf16[32,384], index: 1, kind: input, shape index: {}]
  %s2 = inlined_call_operand.vmem [shape: f32[1,384], index: 2, kind: input, shape index: {}]
  %s3 = inlined_call_operand.hbm [shape: bf16[384,128], index: 3, kind: input, shape index: {}]
  %s4 = inlined_call_operand.vmem [shape: f32[1,128], index: 4, kind: input, shape index: {}]
  %s5 = inlined_call_operand.hbm [shape: f32[8,128], index: 5, kind: output, shape index: {}]
  %s6 = sld [smem:[#allocation0]]
  $region42: #{tpu_custom_call.1} parent=0
    _
  %s8 = ssub.s32 1, %s6
  %s9 = scalar_select 0, %s8, %s6
  $region1: #{tpu_custom_call.1} parent=0
    #allocation2 [shape = 'u8[2048]{0}', space=vmem, size = 0x800, scoped, tag = 'input window, operand 0, single buffered']
    #allocation3 [shape = 's32[1]{0}', space=sflag, size = 0x4, scoped, tag = 'scoped memory for tpu_custom_call.1']
    #allocation4 [shape = 's32[1]{0}', space=sflag, size = 0x4, scoped, tag = 'scoped memory for tpu_custom_call.1']
    #allocation5 [shape = 'u8[24576]{0}', space=vmem, size = 0x6000, scoped, tag = 'input window, operand 1, single buffered']
    #allocation6 [shape = 's32[1]{0}', space=sflag, size = 0x4, scoped, tag = 'scoped memory for tpu_custom_call.1']
    #allocation7 [shape = 'u8[98304]{0}', space=vmem, size = 0x18000, scoped, tag = 'input window, operand 3, single buffered']
    #allocation8 [shape = 'u8[4096]{0}', space=vmem, size = 0x1000, scoped, tag = 'output window, operand 0, single buffered']
    %10 = vsyncpa [#allocation3], 0
    %11 = vsyncpa [#allocation6], 0
    %12 = vsyncpa [#allocation4], 0
    // Predicated region
    $region2: #{tpu_custom_call.1} parent=1 // pred_check
      _
    $region3: #{tpu_custom_call.1} parent=1 // pred_check_branch
      %14 = sbr.rel (0) target = $region5
    $region4: #{tpu_custom_call.1} parent=1 // pred_region
      %s16 = ssub.s32 64, 64
      %17 = vsyncadd [#allocation3], %s16
      %s19 = sshll.u32 [#allocation2], 4
      %s20 = int_to_ptr.vmem [resolvable:$true] %s19
      %22 = dma.hbm_to_vmem [thread:$0]  %s0, 64, %s20, [#allocation3]
    $region5: #{tpu_custom_call.1} parent=1 // pred_fallthru
      _
    // Predicated region
    $region6: #{tpu_custom_call.1} parent=1 // pred_check
      _
    $region7: #{tpu_custom_call.1} parent=1 // pred_check_branch
      %24 = sbr.rel (0) target = $region9
    $region8: #{tpu_custom_call.1} parent=1 // pred_region
      %s26 = ssub.s32 768, 768
      %27 = vsyncadd [#allocation6], %s26
      %s28 = sshll.u32 [#allocation5], 4
      %s29 = int_to_ptr.vmem [resolvable:$true] %s28
      %34 = dma.hbm_to_vmem [thread:$0]  %s1, 768, %s29, [#allocation6], 192, 192, 12
    $region9: #{tpu_custom_call.1} parent=1 // pred_fallthru
      _
    // Predicated region
    $region10: #{tpu_custom_call.1} parent=1 // pred_check
      _
    $region11: #{tpu_custom_call.1} parent=1 // pred_check_branch
      %36 = sbr.rel (0) target = $region13
    $region12: #{tpu_custom_call.1} parent=1 // pred_region
      _
    $region13: #{tpu_custom_call.1} parent=1 // pred_fallthru
      _
    // Predicated region
    $region14: #{tpu_custom_call.1} parent=1 // pred_check
      _
    $region15: #{tpu_custom_call.1} parent=1 // pred_check_branch
      %38 = sbr.rel (0) target = $region17
    $region16: #{tpu_custom_call.1} parent=1 // pred_region
      %s40 = ssub.s32 3072, 3072
      %41 = vsyncadd [#allocation6], %s40
      %s42 = sshll.u32 [#allocation7], 4
      %s43 = int_to_ptr.vmem [resolvable:$true] %s42
      %48 = dma.hbm_to_vmem [thread:$0]  %s3, 3072, %s43, [#allocation6], 64, 64, 4
    $region17: #{tpu_custom_call.1} parent=1 // pred_fallthru
      _
    // Predicated region
    $region18: #{tpu_custom_call.1} parent=1 // pred_check
      _
    $region19: #{tpu_custom_call.1} parent=1 // pred_check_branch
      %50 = sbr.rel (0) target = $region21
    $region20: #{tpu_custom_call.1} parent=1 // pred_region
      _
    $region21: #{tpu_custom_call.1} parent=1 // pred_fallthru
      _
    // Predicated region
    $region22: #{tpu_custom_call.1} parent=1 // pred_check
      _
    $region23: #{tpu_custom_call.1} parent=1 // pred_check_branch
      %52 = sbr.rel (0) target = $region25
    $region24: #{tpu_custom_call.1} parent=1 // pred_region
      %53 = dma.done [#allocation3], 64
    $region25: #{tpu_custom_call.1} parent=1 // pred_fallthru
      _
    // Predicated region
    $region26: #{tpu_custom_call.1} parent=1 // pred_check
      _
    $region27: #{tpu_custom_call.1} parent=1 // pred_check_branch
      %55 = sbr.rel (0) target = $region29
    $region28: #{tpu_custom_call.1} parent=1 // pred_region
      %56 = dma.done [#allocation6], 768
    $region29: #{tpu_custom_call.1} parent=1 // pred_fallthru
      _
    // Predicated region
    $region30: #{tpu_custom_call.1} parent=1 // pred_check
      _
    $region31: #{tpu_custom_call.1} parent=1 // pred_check_branch
      %58 = sbr.rel (0) target = $region33
    $region32: #{tpu_custom_call.1} parent=1 // pred_region
      %59 = dma.done [#allocation6], 3072
    $region33: #{tpu_custom_call.1} parent=1 // pred_fallthru
      _
    %v61 = vld [vmem:[#allocation2] sm:$0xf]
    %v62 = vld [vmem:[#allocation5] sm:$0xff]
    %v63 = vld [vmem:[#allocation5 + $0x8] sm:$0xf]
    %v64 = vld [vmem:[#allocation5 + $0xc] sm:$0xff]
    %v65 = vld [vmem:[#allocation5 + $0x14] sm:$0xf]
    %v66 = vld [vmem:[#allocation5 + $0x18] sm:$0xff]
    %v67 = vld [vmem:[#allocation5 + $0x20] sm:$0xf]
    %v68 = vld [vmem:[#allocation5 + $0x24] sm:$0xff]
    %v69 = vld [vmem:[#allocation5 + $0x2c] sm:$0xf]
    %v70 = vld [vmem:[%s2] sm:$0x7]
    %v72 = vlaneseq
    %v73 = vshrl.u32 %v72, 7
    %v74 = vsub.s32 0, %v73
    %v75 = vrot.slane %v70, %v74
    %v76 = vlaneseq
    %v77 = vshrl.u32 %v76, 7
    %v78 = vsub.s32 1, %v77
    %v79 = vrot.slane %v70, %v78
    %v80 = vlaneseq
    %v81 = vshrl.u32 %v80, 7
    %v82 = vsub.s32 2, %v81
    %v83 = vrot.slane %v70, %v82
    %v95 = vunpack.c.l.b16 %v62
    %v96 = vunpack.c.h.b16 %v62
    %v97 = vunpack.c.l.b16 %v63
    %v98 = vunpack.c.l.b16 %v64
    %v99 = vunpack.c.h.b16 %v64
    %v100 = vunpack.c.l.b16 %v65
    %v101 = vunpack.c.l.b16 %v66
    %v102 = vunpack.c.h.b16 %v66
    %v103 = vunpack.c.l.b16 %v67
    %v104 = vunpack.c.l.b16 %v68
    %v105 = vunpack.c.h.b16 %v68
    %v106 = vunpack.c.l.b16 %v69
    %v107 = vpack.c.b16 %v98, %v95
    %v108 = vpack.c.b16 %v99, %v96
    %v109 = vpack.c.b16 %v100, %v97
    %v110 = vpack.c.b16 %v104, %v101
    %v111 = vpack.c.b16 %v105, %v102
    %v112 = vpack.c.b16 %v106, %v103
    %vm119 = vcmask 261120
    %v121 = vsel %vm119, %v61, 0
    %123 = vmatprep.subr.bf16.mxu0 %v108
    %124 = vmatpush1.bf16.msra.mxu0 %v107
    %125 = vmatprep.subr.bf16.mxu0 %v111
    %126 = vmatpush1.bf16.msra.mxu0 %v110
    %127 = vmatprep.subr.bf16.mxu0 0
    %128 = vmatpush1.bf16.msra.mxu0 0
    %129 = vmatprep.subr.bf16.mxu0 0
    %130 = vmatpush1.bf16.msra.mxu0 0
    %131 = vmatprep.subr.bf16.mxu0 0
    %132 = vmatpush1.bf16.msra.mxu0 0
    %133 = vmatprep.subr.bf16.mxu0 0
    %134 = vmatpush1.bf16.msra.mxu0 0
    %135 = vmatprep.subr.bf16.mxu0 0
    %136 = vmatpush1.bf16.msra.mxu0 0
    %137 = vmatprep.subr.bf16.mxu0 0
    %138 = vmatpush1.bf16.msra.mxu0 0
    %139 = vmatprep.subr.bf16.mxu0 0
    %140 = vmatpush1.bf16.msra.mxu0 0
    %141 = vmatprep.subr.bf16.mxu0 0
    %142 = vmatpush1.bf16.msra.mxu0 0
    %143 = vmatprep.subr.bf16.mxu0 0
    %144 = vmatpush1.bf16.msra.mxu0 0
    %145 = vmatprep.subr.bf16.mxu0 0
    %146 = vmatpush1.bf16.msra.mxu0 0
    %147 = vmatprep.subr.bf16.mxu0 0
    %148 = vmatpush1.bf16.msra.mxu0 0
    %149 = vmatprep.subr.bf16.mxu0 0
    %150 = vmatpush1.bf16.msra.mxu0 0
    %151 = vmatprep.subr.bf16.mxu0 0
    %152 = vmatpush1.bf16.msra.mxu0 0
    %153 = vmatprep.subr.bf16.mxu0 0
    %154 = vmatpush1.bf16.msra.mxu0 0
    %155 = vmatprep.mubr.bf16.mxu0 0
    %156 = vmatmul.mubr.bf16.gmra.mrb[0].mxu0 %v121
    %v157 = vpop.f32.mrb[0].mxu0
    %v158 = vadd.f32 %v75, %v157
    %v159 = vpop.f32.mrb[0].mxu0
    %v160 = vadd.f32 %v79, %v159
    %v161 = vpop.f32.mrb[0].mxu0
    %v162 = vpop.f32.mrb[0].mxu0
    %163 = vdwg.mxu0
    %164 = vmatprep.subr.bf16.mxu0 0
    %165 = vmatpush1.bf16.msra.mxu0 %v109
    %166 = vmatprep.subr.bf16.mxu0 0
    %167 = vmatpush1.bf16.msra.mxu0 %v112
    %168 = vmatprep.subr.bf16.mxu0 0
    %169 = vmatpush1.bf16.msra.mxu0 0
    %170 = vmatprep.subr.bf16.mxu0 0
    %171 = vmatpush1.bf16.msra.mxu0 0
    %172 = vmatprep.subr.bf16.mxu0 0
    %173 = vmatpush1.bf16.msra.mxu0 0
    %174 = vmatprep.subr.bf16.mxu0 0
    %175 = vmatpush1.bf16.msra.mxu0 0
    %176 = vmatprep.subr.bf16.mxu0 0
    %177 = vmatpush1.bf16.msra.mxu0 0
    %178 = vmatprep.subr.bf16.mxu0 0
    %179 = vmatpush1.bf16.msra.mxu0 0
    %180 = vmatprep.subr.bf16.mxu0 0
    %181 = vmatpush1.bf16.msra.mxu0 0
    %182 = vmatprep.subr.bf16.mxu0 0
    %183 = vmatpush1.bf16.msra.mxu0 0
    %184 = vmatprep.subr.bf16.mxu0 0
    %185 = vmatpush1.bf16.msra.mxu0 0
    %186 = vmatprep.subr.bf16.mxu0 0
    %187 = vmatpush1.bf16.msra.mxu0 0
    %188 = vmatprep.subr.bf16.mxu0 0
    %189 = vmatpush1.bf16.msra.mxu0 0
    %190 = vmatprep.subr.bf16.mxu0 0
    %191 = vmatpush1.bf16.msra.mxu0 0
    %192 = vmatprep.subr.bf16.mxu0 0
    %193 = vmatpush1.bf16.msra.mxu0 0
    %194 = vmatprep.subr.bf16.mxu0 0
    %195 = vmatpush1.bf16.msra.mxu0 0
    %196 = vmatprep.mubr.bf16.mxu0 0
    %197 = vmatmul.mubr.bf16.gmra.mrb[0].mxu0 %v121
    %v198 = vpop.f32.mrb[0].mxu0
    %v199 = vadd.f32 %v83, %v198
    %v200 = vpop.f32.mrb[0].mxu0
    %v201 = vpop.f32.mrb[0].mxu0
    %v202 = vpop.f32.mrb[0].mxu0
    %203 = vdwg.mxu0
    %v204 = vpack.c.bf16 %v158, %v158
    %v205 = vpack.c.bf16 %v160, %v160
    %v206 = vpack.c.bf16 %v199, %v199
    %v207 = vld [vmem:[#allocation7] sm:$0xf]
    %v208 = vld [vmem:[#allocation7 + $0x4] sm:$0xf]
    %v209 = vld [vmem:[#allocation7 + $0x8] sm:$0xf]
    %v210 = vld [vmem:[#allocation7 + $0xc] sm:$0xf]
    %v211 = vld [vmem:[#allocation7 + $0x10] sm:$0xf]
    %v212 = vld [vmem:[#allocation7 + $0x14] sm:$0xf]
    %v213 = vld [vmem:[#allocation7 + $0x18] sm:$0xf]
    %v214 = vld [vmem:[#allocation7 + $0x1c] sm:$0xf]
    %v215 = vld [vmem:[#allocation7 + $0x20] sm:$0xf]
    %v216 = vld [vmem:[#allocation7 + $0x24] sm:$0xf]
    %v217 = vld [vmem:[#allocation7 + $0x28] sm:$0xf]
    %v218 = vld [vmem:[#allocation7 + $0x2c] sm:$0xf]
    %v219 = vld [vmem:[#allocation7 + $0x30] sm:$0xf]
    %v220 = vld [vmem:[#allocation7 + $0x34] sm:$0xf]
    %v221 = vld [vmem:[#allocation7 + $0x38] sm:$0xf]
    %v222 = vld [vmem:[#allocation7 + $0x3c] sm:$0xf]
    %v223 = vld [vmem:[#allocation7 + $0x40] sm:$0xf]
    %v224 = vld [vmem:[#allocation7 + $0x44] sm:$0xf]
    %v225 = vld [vmem:[#allocation7 + $0x48] sm:$0xf]
    %v226 = vld [vmem:[#allocation7 + $0x4c] sm:$0xf]
    %v227 = vld [vmem:[#allocation7 + $0x50] sm:$0xf]
    %v228 = vld [vmem:[#allocation7 + $0x54] sm:$0xf]
    %v229 = vld [vmem:[#allocation7 + $0x58] sm:$0xf]
    %v230 = vld [vmem:[#allocation7 + $0x5c] sm:$0xf]
    %v231 = vld [vmem:[#allocation7 + $0x60] sm:$0xf]
    %v232 = vld [vmem:[#allocation7 + $0x64] sm:$0xf]
    %v233 = vld [vmem:[#allocation7 + $0x68] sm:$0xf]
    %v234 = vld [vmem:[#allocation7 + $0x6c] sm:$0xf]
    %v235 = vld [vmem:[#allocation7 + $0x70] sm:$0xf]
    %v236 = vld [vmem:[#allocation7 + $0x74] sm:$0xf]
    %v237 = vld [vmem:[#allocation7 + $0x78] sm:$0xf]
    %v238 = vld [vmem:[#allocation7 + $0x7c] sm:$0xf]
    %v239 = vld [vmem:[#allocation7 + $0x80] sm:$0xf]
    %v240 = vld [vmem:[#allocation7 + $0x84] sm:$0xf]
    %v241 = vld [vmem:[#allocation7 + $0x88] sm:$0xf]
    %v242 = vld [vmem:[#allocation7 + $0x8c] sm:$0xf]
    %v243 = vld [vmem:[#allocation7 + $0x90] sm:$0xf]
    %v244 = vld [vmem:[#allocation7 + $0x94] sm:$0xf]
    %v245 = vld [vmem:[#allocation7 + $0x98] sm:$0xf]
    %v246 = vld [vmem:[#allocation7 + $0x9c] sm:$0xf]
    %v247 = vld [vmem:[#allocation7 + $0xa0] sm:$0xf]
    %v248 = vld [vmem:[#allocation7 + $0xa4] sm:$0xf]
    %v249 = vld [vmem:[#allocation7 + $0xa8] sm:$0xf]
    %v250 = vld [vmem:[#allocation7 + $0xac] sm:$0xf]
    %v251 = vld [vmem:[#allocation7 + $0xb0] sm:$0xf]
    %v252 = vld [vmem:[#allocation7 + $0xb4] sm:$0xf]
    %v253 = vld [vmem:[#allocation7 + $0xb8] sm:$0xf]
    %v254 = vld [vmem:[#allocation7 + $0xbc] sm:$0xf]
    %v255 = vld [vmem:[%s4] sm:$0x1]
    %v257 = vlaneseq
    %v258 = vshrl.u32 %v257, 7
    %v259 = vsub.s32 0, %v258
    %v260 = vrot.slane %v255, %v259
    %v310 = vunpack.c.l.b16 %v207
    %v311 = vunpack.c.l.b16 %v208
    %v312 = vunpack.c.l.b16 %v209
    %v313 = vunpack.c.l.b16 %v210
    %v314 = vunpack.c.l.b16 %v211
    %v315 = vunpack.c.l.b16 %v212
    %v316 = vunpack.c.l.b16 %v213
    %v317 = vunpack.c.l.b16 %v214
    %v318 = vunpack.c.l.b16 %v215
    %v319 = vunpack.c.l.b16 %v216
    %v320 = vunpack.c.l.b16 %v217
    %v321 = vunpack.c.l.b16 %v218
    %v322 = vunpack.c.l.b16 %v219
    %v323 = vunpack.c.l.b16 %v220
    %v324 = vunpack.c.l.b16 %v221
    %v325 = vunpack.c.l.b16 %v222
    %v326 = vunpack.c.l.b16 %v223
    %v327 = vunpack.c.l.b16 %v224
    %v328 = vunpack.c.l.b16 %v225
    %v329 = vunpack.c.l.b16 %v226
    %v330 = vunpack.c.l.b16 %v227
    %v331 = vunpack.c.l.b16 %v228
    %v332 = vunpack.c.l.b16 %v229
    %v333 = vunpack.c.l.b16 %v230
    %v334 = vunpack.c.l.b16 %v231
    %v335 = vunpack.c.l.b16 %v232
    %v336 = vunpack.c.l.b16 %v233
    %v337 = vunpack.c.l.b16 %v234
    %v338 = vunpack.c.l.b16 %v235
    %v339 = vunpack.c.l.b16 %v236
    %v340 = vunpack.c.l.b16 %v237
    %v341 = vunpack.c.l.b16 %v238
    %v342 = vunpack.c.l.b16 %v239
    %v343 = vunpack.c.l.b16 %v240
    %v344 = vunpack.c.l.b16 %v241
    %v345 = vunpack.c.l.b16 %v242
    %v346 = vunpack.c.l.b16 %v243
    %v347 = vunpack.c.l.b16 %v244
    %v348 = vunpack.c.l.b16 %v245
    %v349 = vunpack.c.l.b16 %v246
    %v350 = vunpack.c.l.b16 %v247
    %v351 = vunpack.c.l.b16 %v248
    %v352 = vunpack.c.l.b16 %v249
    %v353 = vunpack.c.l.b16 %v250
    %v354 = vunpack.c.l.b16 %v251
    %v355 = vunpack.c.l.b16 %v252
    %v356 = vunpack.c.l.b16 %v253
    %v357 = vunpack.c.l.b16 %v254
    %v358 = vpack.c.b16 %v311, %v310
    %v359 = vpack.c.b16 %v313, %v312
    %v360 = vpack.c.b16 %v315, %v314
    %v361 = vpack.c.b16 %v317, %v316
    %v362 = vpack.c.b16 %v319, %v318
    %v363 = vpack.c.b16 %v321, %v320
    %v364 = vpack.c.b16 %v323, %v322
    %v365 = vpack.c.b16 %v325, %v324
    %v366 = vpack.c.b16 %v327, %v326
    %v367 = vpack.c.b16 %v329, %v328
    %v368 = vpack.c.b16 %v331, %v330
    %v369 = vpack.c.b16 %v333, %v332
    %v370 = vpack.c.b16 %v335, %v334
    %v371 = vpack.c.b16 %v337, %v336
    %v372 = vpack.c.b16 %v339, %v338
    %v373 = vpack.c.b16 %v341, %v340
    %v374 = vpack.c.b16 %v343, %v342
    %v375 = vpack.c.b16 %v345, %v344
    %v376 = vpack.c.b16 %v347, %v346
    %v377 = vpack.c.b16 %v349, %v348
    %v378 = vpack.c.b16 %v351, %v350
    %v379 = vpack.c.b16 %v353, %v352
    %v380 = vpack.c.b16 %v355, %v354
    %v381 = vpack.c.b16 %v357, %v356
    %406 = vmatprep.subr.bf16.mxu0 0
    %407 = vmatpush1.bf16.msra.mxu0 %v358
    %408 = vmatprep.subr.bf16.mxu0 0
    %409 = vmatpush1.bf16.msra.mxu0 %v359
    %410 = vmatprep.subr.bf16.mxu0 0
    %411 = vmatpush1.bf16.msra.mxu0 %v360
    %412 = vmatprep.subr.bf16.mxu0 0
    %413 = vmatpush1.bf16.msra.mxu0 %v361
    %414 = vmatprep.subr.bf16.mxu0 0
    %415 = vmatpush1.bf16.msra.mxu0 %v362
    %416 = vmatprep.subr.bf16.mxu0 0
    %417 = vmatpush1.bf16.msra.mxu0 %v363
    %418 = vmatprep.subr.bf16.mxu0 0
    %419 = vmatpush1.bf16.msra.mxu0 %v364
    %420 = vmatprep.subr.bf16.mxu0 0
    %421 = vmatpush1.bf16.msra.mxu0 %v365
    %422 = vmatprep.subr.bf16.mxu0 0
    %423 = vmatpush1.bf16.msra.mxu0 %v366
    %424 = vmatprep.subr.bf16.mxu0 0
    %425 = vmatpush1.bf16.msra.mxu0 %v367
    %426 = vmatprep.subr.bf16.mxu0 0
    %427 = vmatpush1.bf16.msra.mxu0 %v368
    %428 = vmatprep.subr.bf16.mxu0 0
    %429 = vmatpush1.bf16.msra.mxu0 %v369
    %430 = vmatprep.subr.bf16.mxu0 0
    %431 = vmatpush1.bf16.msra.mxu0 %v370
    %432 = vmatprep.subr.bf16.mxu0 0
    %433 = vmatpush1.bf16.msra.mxu0 %v371
    %434 = vmatprep.subr.bf16.mxu0 0
    %435 = vmatpush1.bf16.msra.mxu0 %v372
    %436 = vmatprep.subr.bf16.mxu0 0
    %437 = vmatpush1.bf16.msra.mxu0 %v373
    %438 = vmatprep.mubr.bf16.mxu0 %v205
    %439 = vmatmul.mubr.bf16.gmra.mrb[0].mxu0 %v204
    %v440 = vpop.f32.mrb[0].mxu0
    %v441 = vadd.f32 %v260, %v440
    %v442 = vpop.f32.mrb[0].mxu0
    %v443 = vpop.f32.mrb[0].mxu0
    %v444 = vpop.f32.mrb[0].mxu0
    %445 = vdwg.mxu0
    %446 = vmatprep.subr.bf16.mxu0 0
    %447 = vmatpush1.bf16.msra.mxu0 %v374
    %448 = vmatprep.subr.bf16.mxu0 0
    %449 = vmatpush1.bf16.msra.mxu0 %v375
    %450 = vmatprep.subr.bf16.mxu0 0
    %451 = vmatpush1.bf16.msra.mxu0 %v376
    %452 = vmatprep.subr.bf16.mxu0 0
    %453 = vmatpush1.bf16.msra.mxu0 %v377
    %454 = vmatprep.subr.bf16.mxu0 0
    %455 = vmatpush1.bf16.msra.mxu0 %v378
    %456 = vmatprep.subr.bf16.mxu0 0
    %457 = vmatpush1.bf16.msra.mxu0 %v379
    %458 = vmatprep.subr.bf16.mxu0 0
    %459 = vmatpush1.bf16.msra.mxu0 %v380
    %460 = vmatprep.subr.bf16.mxu0 0
    %461 = vmatpush1.bf16.msra.mxu0 %v381
    %462 = vmatprep.subr.bf16.mxu0 0
    %463 = vmatpush1.bf16.msra.mxu0 0
    %464 = vmatprep.subr.bf16.mxu0 0
    %465 = vmatpush1.bf16.msra.mxu0 0
    %466 = vmatprep.subr.bf16.mxu0 0
    %467 = vmatpush1.bf16.msra.mxu0 0
    %468 = vmatprep.subr.bf16.mxu0 0
    %469 = vmatpush1.bf16.msra.mxu0 0
    %470 = vmatprep.subr.bf16.mxu0 0
    %471 = vmatpush1.bf16.msra.mxu0 0
    %472 = vmatprep.subr.bf16.mxu0 0
    %473 = vmatpush1.bf16.msra.mxu0 0
    %474 = vmatprep.subr.bf16.mxu0 0
    %475 = vmatpush1.bf16.msra.mxu0 0
    %476 = vmatprep.subr.bf16.mxu0 0
    %477 = vmatpush1.bf16.msra.mxu0 0
    %478 = vmatprep.mubr.bf16.mxu0 0
    %479 = vmatmul.mubr.bf16.gmra.mrb[0].mxu0 %v206
    %v480 = vpop.f32.mrb[0].mxu0
    %v481 = vadd.f32 %v441, %v480
    %v482 = vpop.f32.mrb[0].mxu0
    %v483 = vpop.f32.mrb[0].mxu0
    %v484 = vpop.f32.mrb[0].mxu0
    %485 = vdwg.mxu0
    %486 = vst [vmem:[#allocation8] sm:$0xff] %v481
    // Predicated region
    $region34: #{tpu_custom_call.1} parent=1 // pred_check
      _
    $region35: #{tpu_custom_call.1} parent=1 // pred_check_branch
      %488 = sbr.rel (0) target = $region37
    $region36: #{tpu_custom_call.1} parent=1 // pred_region
      %s490 = ssub.s32 128, 128
      %491 = vsyncadd [#allocation4], %s490
      %s493 = sshll.u32 [#allocation8], 4
      %s494 = int_to_ptr.vmem [resolvable:$true] %s493
      %496 = dma.vmem_to_hbm [thread:$0]  %s494, 128, %s5, [#allocation4]
    $region37: #{tpu_custom_call.1} parent=1 // pred_fallthru
      _
    // Predicated region
    $region38: #{tpu_custom_call.1} parent=1 // pred_check
      _
    $region39: #{tpu_custom_call.1} parent=1 // pred_check_branch
      %498 = sbr.rel (0) target = $region41
    $region40: #{tpu_custom_call.1} parent=1 // pred_region
      %499 = dma.done [#allocation4], 128
    $region41: #{tpu_custom_call.1} parent=1 // pred_fallthru
      _
    %500 = vsyncpa [#allocation3], 1
    %501 = vsyncpa [#allocation6], 1
    %502 = vsyncpa [#allocation4], 1

</llo_original>
